<compile_context>
chip_gen: v5e
topology: v5e:2x2
jax: 0.10.0
libtpu: 0.0.40
codegen_flags: <defaults>
</compile_context>

<pallas_src>
import functools

import numpy as np
import jax
import jax.numpy as jnp
from jax.experimental import pallas as pl
from jax.experimental.pallas import tpu as pltpu

EPS = 1e-10      # matches the module's EPS
COS_EPS = 1e-8   # torch.nn.functional.cosine_similarity default eps


def _att_kernel(x_ref, xt_ref, row_ref, col_ref, edge_out_ref, self_out_ref,
                *, n_edges: int, use_gram: bool):
    """Lane-dense edge-attention kernel.

    edge_out_ref[0, :E] = exp( cos(x[row], x[col]) / (scatter_add(cos, col)[row] + EPS) )
    self_out_ref[0, :N] = exp( 1 / (degree(col) + 1) )
    Lanes >= E (edges) / >= N (nodes) hold harmless finite padding values
    (exactly exp(0)=1 / exp(1)) and are sliced off in the wrapper.
    """
    xt = xt_ref[...]                       # [F, Np] f32 (x transposed, zero-padded rows)
    row = row_ref[...]                     # [1, Ep] i32 (edges on lanes)
    col = col_ref[...]                     # [1, Ep] i32

    Np = xt.shape[1]
    Ep = row.shape[1]

    # ---- One-hot incidence matrices: nodes on sublanes, edges on lanes.
    # Edge-validity (lane < n_edges) is folded ONCE into the col one-hot, so
    # every scatter that uses col_ohT (row_sum, degree) ignores padded lanes
    # and padded-lane att values are forced to exactly 0 (w_col = g = 0).
    node_iota = jax.lax.broadcasted_iota(jnp.int32, (Np, Ep), 0)
    row_ohT = (node_iota == row).astype(jnp.float32)                    # [Np, Ep]
    if n_edges < Ep:
        lane_iota = jax.lax.broadcasted_iota(jnp.int32, (Np, Ep), 1)
        col_ohT = ((node_iota == col) & (lane_iota < n_edges)).astype(jnp.float32)
    else:
        col_ohT = (node_iota == col).astype(jnp.float32)                # [Np, Ep]

    if use_gram:
        # ---- Gram path (good when F >~ N/2): one K=F contraction + gathers.
        x = x_ref[...]                                                  # [Np, F]
        G = jax.lax.dot_general(x, x, (((1,), (1,)), ((), ())),
                                preferred_element_type=jnp.float32)     # [Np, Np]
        M = jax.lax.dot_general(G, col_ohT, (((1,), (0,)), ((), ())),
                                preferred_element_type=jnp.float32)     # [Np, Ep]
        g = jnp.sum(row_ohT * M, axis=0, keepdims=True)                 # [1, Ep]
        # Squared node norms directly from x (lane-dense row, no eye mask).
        diag = jnp.sum(xt * xt, axis=0, keepdims=True)                  # [1, Np]
        w_row = jax.lax.dot_general(diag, row_ohT, (((1,), (0,)), ((), ())),
                                    preferred_element_type=jnp.float32)  # [1, Ep]
        w_col = jax.lax.dot_general(diag, col_ohT, (((1,), (0,)), ((), ())),
                                    preferred_element_type=jnp.float32)  # [1, Ep]
    else:
        # ---- Gather path (good when N >> F): 2*N*F*Ep MACs, no Gram matrix.
        x_row = jax.lax.dot_general(xt, row_ohT, (((1,), (0,)), ((), ())),
                                    preferred_element_type=jnp.float32)  # [F, Ep]
        x_col = jax.lax.dot_general(xt, col_ohT, (((1,), (0,)), ((), ())),
                                    preferred_element_type=jnp.float32)  # [F, Ep]
        g = jnp.sum(x_row * x_col, axis=0, keepdims=True)               # [1, Ep]
        w_row = jnp.sum(x_row * x_row, axis=0, keepdims=True)           # [1, Ep]
        w_col = jnp.sum(x_col * x_col, axis=0, keepdims=True)           # [1, Ep]

    # cos = g / max(||a||*||b||, eps) == g * rsqrt(max(w_row*w_col, eps^2))
    att = g * jax.lax.rsqrt(jnp.maximum(w_row * w_col, COS_EPS * COS_EPS))  # [1, Ep]

    # ---- Scatter-adds on the MXU (contract the edge/lane axis of col_ohT).
    row_sum = jax.lax.dot_general(att, col_ohT, (((1,), (1,)), ((), ())),
                                  preferred_element_type=jnp.float32)   # [1, Np]
    ones_e = jnp.ones((1, Ep), jnp.float32)
    deg = jax.lax.dot_general(ones_e, col_ohT, (((1,), (1,)), ((), ())),
                              preferred_element_type=jnp.float32)       # [1, Np]

    # ---- Gather row_sum at the source node of every edge (MXU).
    rs_row = jax.lax.dot_general(row_sum, row_ohT, (((1,), (0,)), ((), ())),
                                 preferred_element_type=jnp.float32)    # [1, Ep]
    att_norm = att / (rs_row + EPS)                                     # [1, Ep]

    # ---- Self-loop weights, lane-dense over nodes.
    self_w = 1.0 / (deg + 1.0)                                          # [1, Np]

    # ---- Lane-dense, full-width unmasked stores.
    edge_out_ref[...] = jnp.exp(att_norm)
    self_out_ref[...] = jnp.exp(self_w)


def my_layer_forward(x, edge_index, mask, add_self_loops=True,
                     numerator_mode="auto"):
    """JAX/Pallas equivalent of MyLayer.forward.

    x:          [N, F] float32
    edge_index: [2, Etot] int32
    mask:       static boolean numpy array [Etot] (module constant)
    returns:    (edge_index_out [2, E(+N)], att_score_norm [E(+N)])
    """
    N, F = int(x.shape[0]), int(x.shape[1])
    mask_idx = np.nonzero(np.asarray(mask))[0]             # static selection
    edge_index_m = edge_index[:, mask_idx]                 # [2, E]
    row = edge_index_m[0].astype(jnp.int32)
    col = edge_index_m[1].astype(jnp.int32)
    E = int(mask_idx.shape[0])

    # Static regime switch for the numerator formulation.
    if numerator_mode == "gram":
        use_gram = True
    elif numerator_mode == "gather":
        use_gram = False
    else:
        use_gram = (2 * F >= N)

    # Lane-dense padding (static: mask is a module constant, so E is known).
    Ep = ((E + 127) // 128) * 128
    Np = ((N + 127) // 128) * 128

    pad_e = Ep - E
    row_p = jnp.pad(row, (0, pad_e)) if pad_e else row
    col_p = jnp.pad(col, (0, pad_e)) if pad_e else col

    xp = x.astype(jnp.float32)
    if Np > N:
        xp = jnp.pad(xp, ((0, Np - N), (0, 0)))            # zero rows: harmless
    xt = xp.T                                              # [F, Np]

    kernel = functools.partial(_att_kernel, n_edges=E, use_gram=use_gram)
    edge_scores, self_scores = pl.pallas_call(
        kernel,
        out_shape=(jax.ShapeDtypeStruct((1, Ep), jnp.float32),
                   jax.ShapeDtypeStruct((1, Np), jnp.float32)),
        in_specs=[pl.BlockSpec(memory_space=pltpu.MemorySpace.VMEM)] * 4,
        out_specs=(pl.BlockSpec(memory_space=pltpu.MemorySpace.VMEM),
                   pl.BlockSpec(memory_space=pltpu.MemorySpace.VMEM)),
    )(xp, xt, row_p[None, :], col_p[None, :])

    att_edges = edge_scores[0, :E]
    if add_self_loops:
        att_score_norm = jnp.concatenate([att_edges, self_scores[0, :N]])
        loop = jnp.arange(N, dtype=jnp.int32)
        loop_index = jnp.stack([loop, loop], axis=0)       # [2, N]
        edge_index_out = jnp.concatenate([edge_index_m, loop_index], axis=1)
    else:
        att_score_norm = att_edges
        edge_index_out = edge_index_m
    return edge_index_out, att_score_norm


def _ref_numpy(x, edge_index, mask, add_self_loops=True):
    """Pure-numpy replica of the PyTorch forward for verification."""
    x = np.asarray(x, dtype=np.float32)
    ei = np.asarray(edge_index)
    N = x.shape[0]
    row, col = ei[0], ei[1]
    A, B = x[row], x[col]
    dot = (A * B).sum(-1)
    na = np.sqrt((A * A).sum(-1))
    nb = np.sqrt((B * B).sum(-1))
    att = dot / np.maximum(na * nb, COS_EPS)
    m = np.asarray(mask)
    ei_m = ei[:, m]
    att = att[m]
    row, col = ei_m[0], ei_m[1]
    row_sum = np.zeros(N, np.float32)
    np.add.at(row_sum, col, att)
    att_norm = att / (row_sum[row] + EPS)
    if add_self_loops:
        deg = np.zeros(N, np.float32)
        np.add.at(deg, col, np.ones_like(att))
        self_w = 1.0 / (deg + 1.0)
        att_norm = np.concatenate([att_norm, self_w])
        loop = np.arange(N)
        ei_m = np.concatenate([ei_m, np.stack([loop, loop])], axis=1)
    return ei_m, np.exp(att_norm)


if __name__ == "__main__":
    key = jax.random.PRNGKey(0)
    N, F = 16, 32
    n_extra = 32
    Etot = N + n_extra

    kx, ke1, ke2 = jax.random.split(key, 3)
    # Positive features keep cosine sims positive (well-conditioned normalization).
    x = jnp.abs(jax.random.normal(kx, (N, F), dtype=jnp.float32)) + 0.1

    # Deterministic graph: a ring (every node has an incoming edge) + random extras.
    ring_row = jnp.arange(N, dtype=jnp.int32)
    ring_col = (ring_row + 1) % N
    extra_row = jax.random.randint(ke1, (n_extra,), 0, N, dtype=jnp.int32)
    extra_col = jax.random.randint(ke2, (n_extra,), 0, N, dtype=jnp.int32)
    edge_index = jnp.stack(
        [jnp.concatenate([ring_row, extra_row]),
         jnp.concatenate([ring_col, extra_col])], axis=0)          # [2, Etot]

    # Static mask (module constant): keep all ring edges, drop every 3rd extra edge.
    mask = np.ones(Etot, dtype=bool)
    mask[N::3] = False

    ref_ei, ref_att = _ref_numpy(np.asarray(x), np.asarray(edge_index), mask, True)

    # Validate both numerator formulations plus the auto switch.
    for mode in ("auto", "gram", "gather"):
        edge_out, att_out = my_layer_forward(x, edge_index, mask,
                                             add_self_loops=True,
                                             numerator_mode=mode)
        att_out = jax.block_until_ready(att_out)
        edge_out = jax.block_until_ready(edge_out)
        assert np.array_equal(np.asarray(edge_out), ref_ei), f"edge mismatch ({mode})"
        assert np.allclose(np.asarray(att_out), ref_att, rtol=1e-4, atol=1e-5), \
            f"attention score mismatch ({mode})"

    # No-self-loop variant.
    ref_ei2, ref_att2 = _ref_numpy(np.asarray(x), np.asarray(edge_index), mask, False)
    edge_out2, att_out2 = my_layer_forward(x, edge_index, mask, add_self_loops=False)
    att_out2 = jax.block_until_ready(att_out2)
    assert np.array_equal(np.asarray(edge_out2), ref_ei2), "edge mismatch (no loops)"
    assert np.allclose(np.asarray(att_out2), ref_att2, rtol=1e-4, atol=1e-5), \
        "attention score mismatch (no loops)"

    print("KERNEL_OK")
</pallas_src>

<mosaic_0001>
module attributes {stable_mosaic.version = 11 : i64} {
  func.func @_att_kernel(%arg0: memref<128x32xf32, #tpu.memory_space<vmem>>, %arg1: memref<32x128xf32, #tpu.memory_space<vmem>>, %arg2: memref<1x128xi32, #tpu.memory_space<vmem>>, %arg3: memref<1x128xi32, #tpu.memory_space<vmem>>, %arg4: memref<1x128xf32, #tpu.memory_space<vmem>>, %arg5: memref<1x128xf32, #tpu.memory_space<vmem>>) attributes {dimension_semantics = [], scalar_prefetch = 0 : i64, scratch_operands = 0 : i64, tpu.core_type = #tpu.core_type<tc>} {
    %c0 = arith.constant 0 : index
    %c0_0 = arith.constant 0 : index
    %0 = vector.load %arg1[%c0, %c0_0] : memref<32x128xf32, #tpu.memory_space<vmem>>, vector<32x128xf32>
    %c0_1 = arith.constant 0 : index
    %c0_2 = arith.constant 0 : index
    %1 = vector.load %arg2[%c0_1, %c0_2] : memref<1x128xi32, #tpu.memory_space<vmem>>, vector<1x128xi32>
    %c0_3 = arith.constant 0 : index
    %c0_4 = arith.constant 0 : index
    %2 = vector.load %arg3[%c0_3, %c0_4] : memref<1x128xi32, #tpu.memory_space<vmem>>, vector<1x128xi32>
    %3 = tpu.iota {dimensions = array<i32: 0>} : vector<128x128xi32>
    %4 = vector.broadcast %1 : vector<1x128xi32> to vector<128x128xi32>
    %5 = arith.cmpi eq, %3, %4 : vector<128x128xi32>
    %6 = arith.extui %5 : vector<128x128xi1> to vector<128x128xi32>
    %7 = arith.sitofp %6 : vector<128x128xi32> to vector<128x128xf32>
    %8 = tpu.iota {dimensions = array<i32: 1>} : vector<128x128xi32>
    %9 = vector.broadcast %2 : vector<1x128xi32> to vector<128x128xi32>
    %10 = arith.cmpi eq, %3, %9 : vector<128x128xi32>
    %c37_i32 = arith.constant 37 : i32
    %11 = vector.broadcast %c37_i32 : i32 to vector<128x128xi32>
    %12 = arith.cmpi slt, %8, %11 : vector<128x128xi32>
    %13 = arith.andi %10, %12 : vector<128x128xi1>
    %14 = arith.extui %13 : vector<128x128xi1> to vector<128x128xi32>
    %15 = arith.sitofp %14 : vector<128x128xi32> to vector<128x128xf32>
    %c0_5 = arith.constant 0 : index
    %c0_6 = arith.constant 0 : index
    %16 = vector.load %arg0[%c0_5, %c0_6] : memref<128x32xf32, #tpu.memory_space<vmem>>, vector<128x32xf32>
    %cst = arith.constant dense<0.000000e+00> : vector<128x128xf32>
    %17 = tpu.matmul %16, %16, %cst {dimension_numbers = #tpu.dot_dimension_numbers<[1], [1], [0], [0], [0, 0, 1, 0], [], []>} : vector<128x32xf32>, vector<128x32xf32>, vector<128x128xf32> -> vector<128x128xf32>
    %cst_7 = arith.constant dense<0.000000e+00> : vector<128x128xf32>
    %18 = tpu.matmul %17, %15, %cst_7 {dimension_numbers = #tpu.dot_dimension_numbers<[1], [0], [0], [1], [0, 0, 1, 1], [], []>} : vector<128x128xf32>, vector<128x128xf32>, vector<128x128xf32> -> vector<128x128xf32>
    %19 = arith.mulf %7, %18 : vector<128x128xf32>
    %cst_8 = arith.constant dense<0.000000e+00> : vector<128xf32>
    %20 = vector.multi_reduction <add>, %19, %cst_8 [0] : vector<128x128xf32> to vector<128xf32>
    %21 = vector.shape_cast %20 : vector<128xf32> to vector<1x128xf32>
    %22 = arith.mulf %0, %0 : vector<32x128xf32>
    %cst_9 = arith.constant dense<0.000000e+00> : vector<128xf32>
    %23 = vector.multi_reduction <add>, %22, %cst_9 [0] : vector<32x128xf32> to vector<128xf32>
    %24 = vector.shape_cast %23 : vector<128xf32> to vector<1x128xf32>
    %cst_10 = arith.constant dense<0.000000e+00> : vector<1x128xf32>
    %25 = tpu.matmul %24, %7, %cst_10 {dimension_numbers = #tpu.dot_dimension_numbers<[1], [0], [0], [1], [0, 0, 1, 1], [], []>} : vector<1x128xf32>, vector<128x128xf32>, vector<1x128xf32> -> vector<1x128xf32>
    %cst_11 = arith.constant dense<0.000000e+00> : vector<1x128xf32>
    %26 = tpu.matmul %24, %15, %cst_11 {dimension_numbers = #tpu.dot_dimension_numbers<[1], [0], [0], [1], [0, 0, 1, 1], [], []>} : vector<1x128xf32>, vector<128x128xf32>, vector<1x128xf32> -> vector<1x128xf32>
    %27 = arith.mulf %25, %26 : vector<1x128xf32>
    %cst_12 = arith.constant 1.000000e-16 : f32
    %28 = vector.broadcast %cst_12 : f32 to vector<1x128xf32>
    %29 = arith.maximumf %27, %28 : vector<1x128xf32>
    %30 = math.rsqrt %29 : vector<1x128xf32>
    %31 = arith.mulf %21, %30 : vector<1x128xf32>
    %cst_13 = arith.constant dense<0.000000e+00> : vector<1x128xf32>
    %32 = tpu.matmul %31, %15, %cst_13 {dimension_numbers = #tpu.dot_dimension_numbers<[1], [1], [0], [0], [0, 0, 1, 0], [], []>} : vector<1x128xf32>, vector<128x128xf32>, vector<1x128xf32> -> vector<1x128xf32>
    %cst_14 = arith.constant 1.000000e+00 : f32
    %33 = vector.broadcast %cst_14 : f32 to vector<1x128xf32>
    %cst_15 = arith.constant dense<0.000000e+00> : vector<1x128xf32>
    %34 = tpu.matmul %33, %15, %cst_15 {dimension_numbers = #tpu.dot_dimension_numbers<[1], [1], [0], [0], [0, 0, 1, 0], [], []>} : vector<1x128xf32>, vector<128x128xf32>, vector<1x128xf32> -> vector<1x128xf32>
    %cst_16 = arith.constant dense<0.000000e+00> : vector<1x128xf32>
    %35 = tpu.matmul %32, %7, %cst_16 {dimension_numbers = #tpu.dot_dimension_numbers<[1], [0], [0], [1], [0, 0, 1, 1], [], []>} : vector<1x128xf32>, vector<128x128xf32>, vector<1x128xf32> -> vector<1x128xf32>
    %cst_17 = arith.constant 1.000000e-10 : f32
    %36 = vector.broadcast %cst_17 : f32 to vector<1x128xf32>
    %37 = arith.addf %35, %36 : vector<1x128xf32>
    %38 = arith.divf %31, %37 : vector<1x128xf32>
    %cst_18 = arith.constant 1.000000e+00 : f32
    %39 = vector.broadcast %cst_18 : f32 to vector<1x128xf32>
    %40 = arith.addf %34, %39 : vector<1x128xf32>
    %cst_19 = arith.constant 1.000000e+00 : f32
    %41 = vector.broadcast %cst_19 : f32 to vector<1x128xf32>
    %42 = arith.divf %41, %40 : vector<1x128xf32>
    %43 = math.exp %38 : vector<1x128xf32>
    %c0_20 = arith.constant 0 : index
    %c0_21 = arith.constant 0 : index
    %44 = vector.load %arg4[%c0_20, %c0_21] : memref<1x128xf32, #tpu.memory_space<vmem>>, vector<1x128xf32>
    tpu.vector_store %arg4[%c0_20, %c0_21], %43 {strides = array<i32>} : memref<1x128xf32, #tpu.memory_space<vmem>>, vector<1x128xf32>,
    %45 = math.exp %42 : vector<1x128xf32>
    %c0_22 = arith.constant 0 : index
    %c0_23 = arith.constant 0 : index
    %46 = vector.load %arg5[%c0_22, %c0_23] : memref<1x128xf32, #tpu.memory_space<vmem>>, vector<1x128xf32>
    tpu.vector_store %arg5[%c0_22, %c0_23], %45 {strides = array<i32>} : memref<1x128xf32, #tpu.memory_space<vmem>>, vector<1x128xf32>,
    return
  }
}

</mosaic_0001>

<llo_original>
// kernel: tpu_custom_call.1
$region0: #{tpu_custom_call.1}
  #allocation0 [shape = 'u32[]', space=smem, size = 0x4, offset = 0x4, fixed_abs, tag = 'smem constant byte address 0x4 - core index']
  #allocation1 [shape = 'u32[72,128]{1,0:T(1,128)}', space=vmem, size = 0x9000, scoped, tag = 'internal scratch']
  %s0 = inlined_call_operand.vmem [shape: f32[128,32], index: 0, kind: input, shape index: {}]
  %s1 = inlined_call_operand.vmem [shape: f32[32,128], index: 1, kind: input, shape index: {}]
  %s2 = inlined_call_operand.vmem [shape: s32[1,128], index: 2, kind: input, shape index: {}]
  %s3 = inlined_call_operand.vmem [shape: s32[1,128], index: 3, kind: input, shape index: {}]
  %s4 = inlined_call_operand.hbm [shape: f32[1,128], index: 4, kind: output, shape index: {0}]
  %s5 = inlined_call_operand.hbm [shape: f32[1,128], index: 5, kind: output, shape index: {1}]
  %6 = xla_tuple %s4, %s5
  %s7 = sld [smem:[#allocation0]]
  $region34: #{tpu_custom_call.1} parent=0
    _
  %s9 = ssub.s32 1, %s7
  %s10 = scalar_select 0, %s9, %s7
  $region1: #{tpu_custom_call.1} parent=0
    #allocation2 [shape = 'u8[512]{0}', space=vmem, size = 0x400, scoped, tag = 'output window, operand 0, single buffered']
    #allocation3 [shape = 's32[1]{0}', space=sflag, size = 0x4, scoped, tag = 'scoped memory for tpu_custom_call.1']
    #allocation4 [shape = 'u8[512]{0}', space=vmem, size = 0x400, scoped, tag = 'output window, operand 1, single buffered']
    #allocation5 [shape = 's32[1]{0}', space=sflag, size = 0x4, scoped, tag = 'scoped memory for tpu_custom_call.1']
    %11 = vsyncpa [#allocation3], 0
    %12 = vsyncpa [#allocation5], 0
    // Predicated region
    $region2: #{tpu_custom_call.1} parent=1 // pred_check
      _
    $region3: #{tpu_custom_call.1} parent=1 // pred_check_branch
      %14 = sbr.rel (0) target = $region5
    $region4: #{tpu_custom_call.1} parent=1 // pred_region
      _
    $region5: #{tpu_custom_call.1} parent=1 // pred_fallthru
      _
    // Predicated region
    $region6: #{tpu_custom_call.1} parent=1 // pred_check
      _
    $region7: #{tpu_custom_call.1} parent=1 // pred_check_branch
      %16 = sbr.rel (0) target = $region9
    $region8: #{tpu_custom_call.1} parent=1 // pred_region
      _
    $region9: #{tpu_custom_call.1} parent=1 // pred_fallthru
      _
    // Predicated region
    $region10: #{tpu_custom_call.1} parent=1 // pred_check
      _
    $region11: #{tpu_custom_call.1} parent=1 // pred_check_branch
      %18 = sbr.rel (0) target = $region13
    $region12: #{tpu_custom_call.1} parent=1 // pred_region
      _
    $region13: #{tpu_custom_call.1} parent=1 // pred_fallthru
      _
    // Predicated region
    $region14: #{tpu_custom_call.1} parent=1 // pred_check
      _
    $region15: #{tpu_custom_call.1} parent=1 // pred_check_branch
      %20 = sbr.rel (0) target = $region17
    $region16: #{tpu_custom_call.1} parent=1 // pred_region
      _
    $region17: #{tpu_custom_call.1} parent=1 // pred_fallthru
      _
    %v21 = vld [vmem:[%s1] sm:$0xff]
    %v22 = vld [vmem:[%s1 + $0x8] sm:$0xff]
    %v23 = vld [vmem:[%s1 + $0x10] sm:$0xff]
    %v24 = vld [vmem:[%s1 + $0x18] sm:$0xff]
    %v25 = vld [vmem:[%s2] sm:$0x1]
    %v26 = vld [vmem:[%s3] sm:$0x1]
    %v27 = vlaneseq
    %v28 = vshrl.u32 %v27, 7
    %v29 = vadd.s32 %v28, 8
    %v30 = vadd.s32 %v28, 16
    %v31 = vadd.s32 %v28, 24
    %v32 = vadd.s32 %v28, 32
    %v33 = vadd.s32 %v28, 40
    %v34 = vadd.s32 %v28, 48
    %v35 = vadd.s32 %v28, 56
    %v36 = vadd.s32 %v28, 64
    %v37 = vadd.s32 %v28, 72
    %v38 = vadd.s32 %v28, 80
    %v39 = vadd.s32 %v28, 88
    %v40 = vadd.s32 %v28, 96
    %v41 = vadd.s32 %v28, 104
    %v42 = vadd.s32 %v28, 112
    %v43 = vadd.s32 %v28, 120
    %v44 = vperm.slane %v25, 0
    %vm45 = vcmp.eq.s32.totalorder %v28, %v44
    %vm46 = vcmp.eq.s32.totalorder %v29, %v44
    %vm47 = vcmp.eq.s32.totalorder %v30, %v44
    %vm48 = vcmp.eq.s32.totalorder %v31, %v44
    %vm49 = vcmp.eq.s32.totalorder %v32, %v44
    %vm50 = vcmp.eq.s32.totalorder %v33, %v44
    %vm51 = vcmp.eq.s32.totalorder %v34, %v44
    %vm52 = vcmp.eq.s32.totalorder %v35, %v44
    %vm53 = vcmp.eq.s32.totalorder %v36, %v44
    %vm54 = vcmp.eq.s32.totalorder %v37, %v44
    %vm55 = vcmp.eq.s32.totalorder %v38, %v44
    %vm56 = vcmp.eq.s32.totalorder %v39, %v44
    %vm57 = vcmp.eq.s32.totalorder %v40, %v44
    %vm58 = vcmp.eq.s32.totalorder %v41, %v44
    %vm59 = vcmp.eq.s32.totalorder %v42, %v44
    %vm60 = vcmp.eq.s32.totalorder %v43, %v44
    %v61 = vsel %vm45, 1, 0
    %v62 = vsel %vm46, 1, 0
    %v63 = vsel %vm47, 1, 0
    %v64 = vsel %vm48, 1, 0
    %v65 = vsel %vm49, 1, 0
    %v66 = vsel %vm50, 1, 0
    %v67 = vsel %vm51, 1, 0
    %v68 = vsel %vm52, 1, 0
    %v69 = vsel %vm53, 1, 0
    %v70 = vsel %vm54, 1, 0
    %v71 = vsel %vm55, 1, 0
    %v72 = vsel %vm56, 1, 0
    %v73 = vsel %vm57, 1, 0
    %v74 = vsel %vm58, 1, 0
    %v75 = vsel %vm59, 1, 0
    %v76 = vsel %vm60, 1, 0
    %v77 = vcvt.s32.f32 %v61
    %v78 = vcvt.s32.f32 %v62
    %v79 = vcvt.s32.f32 %v63
    %v80 = vcvt.s32.f32 %v64
    %v81 = vcvt.s32.f32 %v65
    %v82 = vcvt.s32.f32 %v66
    %v83 = vcvt.s32.f32 %v67
    %v84 = vcvt.s32.f32 %v68
    %v85 = vcvt.s32.f32 %v69
    %v86 = vcvt.s32.f32 %v70
    %v87 = vcvt.s32.f32 %v71
    %v88 = vcvt.s32.f32 %v72
    %v89 = vcvt.s32.f32 %v73
    %v90 = vcvt.s32.f32 %v74
    %v91 = vcvt.s32.f32 %v75
    %v92 = vcvt.s32.f32 %v76
    %v93 = vlaneseq
    %v94 = vand.u32 %v93, 127
    %v95 = vperm.slane %v26, 0
    %vm96 = vcmp.eq.s32.totalorder %v28, %v95
    %vm97 = vcmp.eq.s32.totalorder %v29, %v95
    %vm98 = vcmp.eq.s32.totalorder %v30, %v95
    %vm99 = vcmp.eq.s32.totalorder %v31, %v95
    %vm100 = vcmp.eq.s32.totalorder %v32, %v95
    %vm101 = vcmp.eq.s32.totalorder %v33, %v95
    %vm102 = vcmp.eq.s32.totalorder %v34, %v95
    %vm103 = vcmp.eq.s32.totalorder %v35, %v95
    %vm104 = vcmp.eq.s32.totalorder %v36, %v95
    %vm105 = vcmp.eq.s32.totalorder %v37, %v95
    %vm106 = vcmp.eq.s32.totalorder %v38, %v95
    %vm107 = vcmp.eq.s32.totalorder %v39, %v95
    %vm108 = vcmp.eq.s32.totalorder %v40, %v95
    %vm109 = vcmp.eq.s32.totalorder %v41, %v95
    %vm110 = vcmp.eq.s32.totalorder %v42, %v95
    %vm111 = vcmp.eq.s32.totalorder %v43, %v95
    %vm112 = vcmp.lt.s32.totalorder %v94, 37
    %vm113 = vmand %vm96, %vm112
    %vm114 = vmand %vm97, %vm112
    %vm115 = vmand %vm98, %vm112
    %vm116 = vmand %vm99, %vm112
    %vm117 = vmand %vm100, %vm112
    %vm118 = vmand %vm101, %vm112
    %vm119 = vmand %vm102, %vm112
    %vm120 = vmand %vm103, %vm112
    %vm121 = vmand %vm104, %vm112
    %vm122 = vmand %vm105, %vm112
    %vm123 = vmand %vm106, %vm112
    %vm124 = vmand %vm107, %vm112
    %vm125 = vmand %vm108, %vm112
    %vm126 = vmand %vm109, %vm112
    %vm127 = vmand %vm110, %vm112
    %vm128 = vmand %vm111, %vm112
    %v129 = vsel %vm113, 1, 0
    %v130 = vsel %vm114, 1, 0
    %v131 = vsel %vm115, 1, 0
    %v132 = vsel %vm116, 1, 0
    %v133 = vsel %vm117, 1, 0
    %v134 = vsel %vm118, 1, 0
    %v135 = vsel %vm119, 1, 0
    %v136 = vsel %vm120, 1, 0
    %v137 = vsel %vm121, 1, 0
    %v138 = vsel %vm122, 1, 0
    %v139 = vsel %vm123, 1, 0
    %v140 = vsel %vm124, 1, 0
    %v141 = vsel %vm125, 1, 0
    %v142 = vsel %vm126, 1, 0
    %v143 = vsel %vm127, 1, 0
    %v144 = vsel %vm128, 1, 0
    %v145 = vcvt.s32.f32 %v129
    %v146 = vcvt.s32.f32 %v130
    %v147 = vcvt.s32.f32 %v131
    %v148 = vcvt.s32.f32 %v132
    %v149 = vcvt.s32.f32 %v133
    %v150 = vcvt.s32.f32 %v134
    %v151 = vcvt.s32.f32 %v135
    %v152 = vcvt.s32.f32 %v136
    %v153 = vcvt.s32.f32 %v137
    %v154 = vcvt.s32.f32 %v138
    %v155 = vcvt.s32.f32 %v139
    %v156 = vcvt.s32.f32 %v140
    %v157 = vcvt.s32.f32 %v141
    %v158 = vcvt.s32.f32 %v142
    %v159 = vcvt.s32.f32 %v143
    %v160 = vcvt.s32.f32 %v144
    %v161 = vld [vmem:[%s0] sm:$0xff]
    %v162 = vld [vmem:[%s0 + $0x8] sm:$0xff]
    %v163 = vld [vmem:[%s0 + $0x10] sm:$0xff]
    %v164 = vld [vmem:[%s0 + $0x18] sm:$0xff]
    %v165 = vld [vmem:[%s0 + $0x20] sm:$0xff]
    %v166 = vld [vmem:[%s0 + $0x28] sm:$0xff]
    %v167 = vld [vmem:[%s0 + $0x30] sm:$0xff]
    %v168 = vld [vmem:[%s0 + $0x38] sm:$0xff]
    %v169 = vld [vmem:[%s0 + $0x40] sm:$0xff]
    %v170 = vld [vmem:[%s0 + $0x48] sm:$0xff]
    %v171 = vld [vmem:[%s0 + $0x50] sm:$0xff]
    %v172 = vld [vmem:[%s0 + $0x58] sm:$0xff]
    %v173 = vld [vmem:[%s0 + $0x60] sm:$0xff]
    %v174 = vld [vmem:[%s0 + $0x68] sm:$0xff]
    %v175 = vld [vmem:[%s0 + $0x70] sm:$0xff]
    %v176 = vld [vmem:[%s0 + $0x78] sm:$0xff]
    %vm177 = vcmask 261120
    %v179 = vsel %vm177, %v161, 0
    %v182 = vsel %vm177, %v162, 0
    %v185 = vsel %vm177, %v163, 0
    %v188 = vsel %vm177, %v164, 0
    %v191 = vsel %vm177, %v165, 0
    %v194 = vsel %vm177, %v166, 0
    %v197 = vsel %vm177, %v167, 0
    %v200 = vsel %vm177, %v168, 0
    %v203 = vsel %vm177, %v169, 0
    %v206 = vsel %vm177, %v170, 0
    %v209 = vsel %vm177, %v171, 0
    %v212 = vsel %vm177, %v172, 0
    %v215 = vsel %vm177, %v173, 0
    %v218 = vsel %vm177, %v174, 0
    %v221 = vsel %vm177, %v175, 0
    %v224 = vsel %vm177, %v176, 0
    %226 = vmatpush.xpose.msra.mxu0 %v224
    %227 = vmatpush.xpose.msra.mxu0 %v221
    %228 = vmatpush.xpose.msra.mxu0 %v218
    %229 = vmatpush.xpose.msra.mxu0 %v215
    %230 = vmatpush.xpose.msra.mxu0 %v212
    %231 = vmatpush.xpose.msra.mxu0 %v209
    %232 = vmatpush.xpose.msra.mxu0 %v206
    %233 = vmatpush.xpose.msra.mxu0 %v203
    %234 = vmatpush.xpose.msra.mxu0 %v200
    %235 = vmatpush.xpose.msra.mxu0 %v197
    %236 = vmatpush.xpose.msra.mxu0 %v194
    %237 = vmatpush.xpose.msra.mxu0 %v191
    %238 = vmatpush.xpose.msra.mxu0 %v188
    %239 = vmatpush.xpose.msra.mxu0 %v185
    %240 = vmatpush.xpose.msra.mxu0 %v182
    %241 = vmatpush.xpose.msra.mxu0 %v179
    %242 = vmatmul.f32.gmra.mxu0 %v179
    %v243 = vpop.f32.mrf.mxu0
    %v244 = vadd.f32 0.0, %v243
    %245 = vmatmul.f32.gmra.mxu0 %v182
    %v246 = vpop.f32.mrf.mxu0
    %v247 = vadd.f32 0.0, %v246
    %248 = vmatmul.f32.gmra.mxu0 %v185
    %v249 = vpop.f32.mrf.mxu0
    %v250 = vadd.f32 0.0, %v249
    %251 = vmatmul.f32.gmra.mxu0 %v188
    %v252 = vpop.f32.mrf.mxu0
    %v253 = vadd.f32 0.0, %v252
    %254 = vmatmul.f32.gmra.mxu0 %v191
    %v255 = vpop.f32.mrf.mxu0
    %v256 = vadd.f32 0.0, %v255
    %257 = vmatmul.f32.gmra.mxu0 %v194
    %v258 = vpop.f32.mrf.mxu0
    %v259 = vadd.f32 0.0, %v258
    %260 = vmatmul.f32.gmra.mxu0 %v197
    %v261 = vpop.f32.mrf.mxu0
    %v262 = vadd.f32 0.0, %v261
    %263 = vmatmul.f32.gmra.mxu0 %v200
    %v264 = vpop.f32.mrf.mxu0
    %v265 = vadd.f32 0.0, %v264
    %266 = vmatmul.f32.gmra.mxu0 %v203
    %v267 = vpop.f32.mrf.mxu0
    %v268 = vadd.f32 0.0, %v267
    %269 = vmatmul.f32.gmra.mxu0 %v206
    %v270 = vpop.f32.mrf.mxu0
    %v271 = vadd.f32 0.0, %v270
    %272 = vmatmul.f32.gmra.mxu0 %v209
    %v273 = vpop.f32.mrf.mxu0
    %v274 = vadd.f32 0.0, %v273
    %275 = vmatmul.f32.gmra.mxu0 %v212
    %v276 = vpop.f32.mrf.mxu0
    %v277 = vadd.f32 0.0, %v276
    %278 = vmatmul.f32.gmra.mxu0 %v215
    %v279 = vpop.f32.mrf.mxu0
    %v280 = vadd.f32 0.0, %v279
    %281 = vmatmul.f32.gmra.mxu0 %v218
    %v282 = vpop.f32.mrf.mxu0
    %v283 = vadd.f32 0.0, %v282
    %284 = vmatmul.f32.gmra.mxu0 %v221
    %v285 = vpop.f32.mrf.mxu0
    %v286 = vadd.f32 0.0, %v285
    %287 = vmatmul.f32.gmra.mxu0 %v224
    %v288 = vpop.f32.mrf.mxu0
    %v289 = vadd.f32 0.0, %v288
    %290 = vdwg.mxu0
    %291 = vmatpush.msra.mxu0 %v160
    %292 = vmatpush.msra.mxu0 %v159
    %293 = vmatpush.msra.mxu0 %v158
    %294 = vmatpush.msra.mxu0 %v157
    %295 = vmatpush.msra.mxu0 %v156
    %296 = vmatpush.msra.mxu0 %v155
    %297 = vmatpush.msra.mxu0 %v154
    %298 = vmatpush.msra.mxu0 %v153
    %299 = vmatpush.msra.mxu0 %v152
    %300 = vmatpush.msra.mxu0 %v151
    %301 = vmatpush.msra.mxu0 %v150
    %302 = vmatpush.msra.mxu0 %v149
    %303 = vmatpush.msra.mxu0 %v148
    %304 = vmatpush.msra.mxu0 %v147
    %305 = vmatpush.msra.mxu0 %v146
    %306 = vmatpush.msra.mxu0 %v145
    %307 = vmatmul.f32.gmra.mxu0 %v244
    %v308 = vpop.f32.mrf.mxu0
    %v309 = vadd.f32 0.0, %v308
    %310 = vmatmul.f32.gmra.mxu0 %v247
    %v311 = vpop.f32.mrf.mxu0
    %v312 = vadd.f32 0.0, %v311
    %313 = vmatmul.f32.gmra.mxu0 %v250
    %v314 = vpop.f32.mrf.mxu0
    %v315 = vadd.f32 0.0, %v314
    %316 = vmatmul.f32.gmra.mxu0 %v253
    %v317 = vpop.f32.mrf.mxu0
    %v318 = vadd.f32 0.0, %v317
    %319 = vmatmul.f32.gmra.mxu0 %v256
    %v320 = vpop.f32.mrf.mxu0
    %v321 = vadd.f32 0.0, %v320
    %322 = vmatmul.f32.gmra.mxu0 %v259
    %v323 = vpop.f32.mrf.mxu0
    %v324 = vadd.f32 0.0, %v323
    %325 = vmatmul.f32.gmra.mxu0 %v262
    %v326 = vpop.f32.mrf.mxu0
    %v327 = vadd.f32 0.0, %v326
    %328 = vmatmul.f32.gmra.mxu0 %v265
    %v329 = vpop.f32.mrf.mxu0
    %v330 = vadd.f32 0.0, %v329
    %331 = vmatmul.f32.gmra.mxu0 %v268
    %v332 = vpop.f32.mrf.mxu0
    %v333 = vadd.f32 0.0, %v332
    %334 = vmatmul.f32.gmra.mxu0 %v271
    %v335 = vpop.f32.mrf.mxu0
    %v336 = vadd.f32 0.0, %v335
    %337 = vmatmul.f32.gmra.mxu0 %v274
    %v338 = vpop.f32.mrf.mxu0
    %v339 = vadd.f32 0.0, %v338
    %340 = vmatmul.f32.gmra.mxu0 %v277
    %v341 = vpop.f32.mrf.mxu0
    %v342 = vadd.f32 0.0, %v341
    %343 = vmatmul.f32.gmra.mxu0 %v280
    %v344 = vpop.f32.mrf.mxu0
    %v345 = vadd.f32 0.0, %v344
    %346 = vmatmul.f32.gmra.mxu0 %v283
    %v347 = vpop.f32.mrf.mxu0
    %v348 = vadd.f32 0.0, %v347
    %349 = vmatmul.f32.gmra.mxu0 %v286
    %v350 = vpop.f32.mrf.mxu0
    %v351 = vadd.f32 0.0, %v350
    %352 = vmatmul.f32.gmra.mxu0 %v289
    %v353 = vpop.f32.mrf.mxu0
    %v354 = vadd.f32 0.0, %v353
    %355 = vdwg.mxu0
    %v356 = vmul.f32 %v77, %v309
    %v357 = vmul.f32 %v78, %v312
    %v358 = vmul.f32 %v79, %v315
    %v359 = vmul.f32 %v80, %v318
    %v360 = vmul.f32 %v81, %v321
    %v361 = vmul.f32 %v82, %v324
    %v362 = vmul.f32 %v83, %v327
    %v363 = vmul.f32 %v84, %v330
    %v364 = vmul.f32 %v85, %v333
    %v365 = vmul.f32 %v86, %v336
    %v366 = vmul.f32 %v87, %v339
    %v367 = vmul.f32 %v88, %v342
    %v368 = vmul.f32 %v89, %v345
    %v369 = vmul.f32 %v90, %v348
    %v370 = vmul.f32 %v91, %v351
    %v371 = vmul.f32 %v92, %v354
    %v372 = vadd.f32 %v356, %v357
    %v373 = vadd.f32 %v372, %v358
    %v374 = vadd.f32 %v373, %v359
    %v375 = vadd.f32 %v374, %v360
    %v376 = vadd.f32 %v375, %v361
    %v377 = vadd.f32 %v376, %v362
    %v378 = vadd.f32 %v377, %v363
    %v379 = vadd.f32 %v378, %v364
    %v380 = vadd.f32 %v379, %v365
    %v381 = vadd.f32 %v380, %v366
    %v382 = vadd.f32 %v381, %v367
    %v383 = vadd.f32 %v382, %v368
    %v384 = vadd.f32 %v383, %v369
    %v385 = vadd.f32 %v384, %v370
    %v386 = vadd.f32 %v385, %v371
    %v387 = vrot.slane %v386, 4
    %v388 = vadd.f32 %v386, %v387
    %v389 = vrot.slane %v388, 2
    %v390 = vadd.f32 %v388, %v389
    %v391 = vrot.slane %v390, 1
    %v392 = vadd.f32 %v390, %v391
    %v393 = vmul.f32 %v21, %v21
    %v394 = vmul.f32 %v22, %v22
    %v395 = vmul.f32 %v23, %v23
    %v396 = vmul.f32 %v24, %v24
    %v397 = vadd.f32 %v393, %v394
    %v398 = vadd.f32 %v397, %v395
    %v399 = vadd.f32 %v398, %v396
    %v400 = vrot.slane %v399, 4
    %v401 = vadd.f32 %v399, %v400
    %v402 = vrot.slane %v401, 2
    %v403 = vadd.f32 %v401, %v402
    %v404 = vrot.slane %v403, 1
    %v405 = vadd.f32 %v403, %v404
    %406 = vmatpush.msra.mxu0 %v92
    %407 = vmatpush.msra.mxu0 %v91
    %408 = vmatpush.msra.mxu0 %v90
    %409 = vmatpush.msra.mxu0 %v89
    %410 = vmatpush.msra.mxu0 %v88
    %411 = vmatpush.msra.mxu0 %v87
    %412 = vmatpush.msra.mxu0 %v86
    %413 = vmatpush.msra.mxu0 %v85
    %414 = vmatpush.msra.mxu0 %v84
    %415 = vmatpush.msra.mxu0 %v83
    %416 = vmatpush.msra.mxu0 %v82
    %417 = vmatpush.msra.mxu0 %v81
    %418 = vmatpush.msra.mxu0 %v80
    %419 = vmatpush.msra.mxu0 %v79
    %420 = vmatpush.msra.mxu0 %v78
    %421 = vmatpush.msra.mxu0 %v77
    %422 = vmatmul.f32.gmra.mxu0 %v405
    %v423 = vpop.f32.mrf.mxu0
    %v424 = vadd.f32 0.0, %v423
    %425 = vdwg.mxu0
    %426 = vmatpush.msra.mxu0 %v160
    %427 = vmatpush.msra.mxu0 %v159
    %428 = vmatpush.msra.mxu0 %v158
    %429 = vmatpush.msra.mxu0 %v157
    %430 = vmatpush.msra.mxu0 %v156
    %431 = vmatpush.msra.mxu0 %v155
    %432 = vmatpush.msra.mxu0 %v154
    %433 = vmatpush.msra.mxu0 %v153
    %434 = vmatpush.msra.mxu0 %v152
    %435 = vmatpush.msra.mxu0 %v151
    %436 = vmatpush.msra.mxu0 %v150
    %437 = vmatpush.msra.mxu0 %v149
    %438 = vmatpush.msra.mxu0 %v148
    %439 = vmatpush.msra.mxu0 %v147
    %440 = vmatpush.msra.mxu0 %v146
    %441 = vmatpush.msra.mxu0 %v145
    %442 = vmatmul.f32.gmra.mxu0 %v405
    %v443 = vpop.f32.mrf.mxu0
    %v444 = vadd.f32 0.0, %v443
    %445 = vdwg.mxu0
    %v446 = vmul.f32 %v424, %v444
    %v447 = vmax.f32 %v446, 1e-16
    %v448 = vrsqrt.pop %v447
    %v449 = vmul.f32 %v448, %v447
    %v450 = vmul.f32 %v449, %v448
    %v451 = vmul.f32 0.5, %v450
    %v452 = vsub.f32 1.5, %v451
    %v453 = vmul.f32 %v448, %v452
    %vm454 = vweird.f32 %v447
    %vm455 = vweird.f32 %v448
    %vm456 = vmor %vm454, %vm455
    %v457 = vsel %vm456, %v448, %v453
    %v458 = vmul.f32 %v392, %v457
    %459 = vmatpush.xpose.msra.mxu0 %v160
    %460 = vmatpush.xpose.msra.mxu0 %v159
    %461 = vmatpush.xpose.msra.mxu0 %v158
    %462 = vmatpush.xpose.msra.mxu0 %v157
    %463 = vmatpush.xpose.msra.mxu0 %v156
    %464 = vmatpush.xpose.msra.mxu0 %v155
    %465 = vmatpush.xpose.msra.mxu0 %v154
    %466 = vmatpush.xpose.msra.mxu0 %v153
    %467 = vmatpush.xpose.msra.mxu0 %v152
    %468 = vmatpush.xpose.msra.mxu0 %v151
    %469 = vmatpush.xpose.msra.mxu0 %v150
    %470 = vmatpush.xpose.msra.mxu0 %v149
    %471 = vmatpush.xpose.msra.mxu0 %v148
    %472 = vmatpush.xpose.msra.mxu0 %v147
    %473 = vmatpush.xpose.msra.mxu0 %v146
    %474 = vmatpush.xpose.msra.mxu0 %v145
    %475 = vmatmul.f32.gmra.mxu0 %v458
    %v476 = vpop.f32.mrf.mxu0
    %v477 = vadd.f32 0.0, %v476
    %478 = vdwg.mxu0
    %479 = vmatpush.msra.mxu0 %v92
    %480 = vmatpush.msra.mxu0 %v91
    %481 = vmatpush.msra.mxu0 %v90
    %482 = vmatpush.msra.mxu0 %v89
    %483 = vmatpush.msra.mxu0 %v88
    %484 = vmatpush.msra.mxu0 %v87
    %485 = vmatpush.msra.mxu0 %v86
    %486 = vmatpush.msra.mxu0 %v85
    %487 = vmatpush.msra.mxu0 %v84
    %488 = vmatpush.msra.mxu0 %v83
    %489 = vmatpush.msra.mxu0 %v82
    %490 = vmatpush.msra.mxu0 %v81
    %491 = vmatpush.msra.mxu0 %v80
    %492 = vmatpush.msra.mxu0 %v79
    %493 = vmatpush.msra.mxu0 %v78
    %494 = vmatpush.msra.mxu0 %v77
    %495 = vmatmul.f32.gmra.mxu0 %v477
    %v496 = vpop.f32.mrf.mxu0
    %v497 = vadd.f32 1e-10, %v496
    %498 = vdwg.mxu0
    %v499 = vrcp.pop %v497
    %v500 = vmul.f32 %v497, %v499
    %v501 = vsub.f32 1.0, %v500
    %v502 = vmul.f32 %v499, %v501
    %v503 = vadd.f32 %v499, %v502
    %vm504 = vweird.f32 %v497
    %vm505 = vweird.f32 %v499
    %vm506 = vmor %vm504, %vm505
    %v507 = vsel %vm506, %v499, %v503
    %v508 = vand.u32 2147483647, %v497
    %vm509 = vcmp.eq.f32.partialorder %v508, 8.507059e+37
    %v510 = vand.u32 %v497, 2147483648
    %v511 = vor.u32 1.1754944e-38, %v510
    %v512 = vsel %vm509, %v511, %v507
    %v513 = vmul.f32 %v458, %v512
    %514 = vmatpush.xpose.msra.mxu0 %v160
    %515 = vmatpush.xpose.msra.mxu0 %v159
    %516 = vmatpush.xpose.msra.mxu0 %v158
    %517 = vmatpush.xpose.msra.mxu0 %v157
    %518 = vmatpush.xpose.msra.mxu0 %v156
    %519 = vmatpush.xpose.msra.mxu0 %v155
    %520 = vmatpush.xpose.msra.mxu0 %v154
    %521 = vmatpush.xpose.msra.mxu0 %v153
    %522 = vmatpush.xpose.msra.mxu0 %v152
    %523 = vmatpush.xpose.msra.mxu0 %v151
    %524 = vmatpush.xpose.msra.mxu0 %v150
    %525 = vmatpush.xpose.msra.mxu0 %v149
    %526 = vmatpush.xpose.msra.mxu0 %v148
    %527 = vmatpush.xpose.msra.mxu0 %v147
    %528 = vmatpush.xpose.msra.mxu0 %v146
    %529 = vmatpush.xpose.msra.mxu0 %v145
    %530 = vmatmul.f32.gmra.mxu0 1.0
    %v531 = vpop.f32.mrf.mxu0
    %v532 = vadd.f32 1.0, %v531
    %533 = vdwg.mxu0
    %v534 = vrcp.pop %v532
    %v535 = vmul.f32 %v532, %v534
    %v536 = vsub.f32 1.0, %v535
    %v537 = vmul.f32 %v534, %v536
    %v538 = vadd.f32 %v534, %v537
    %vm539 = vweird.f32 %v532
    %vm540 = vweird.f32 %v534
    %vm541 = vmor %vm539, %vm540
    %v542 = vsel %vm541, %v534, %v538
    %v543 = vand.u32 2147483647, %v532
    %vm544 = vcmp.eq.f32.partialorder %v543, 8.507059e+37
    %v545 = vand.u32 %v532, 2147483648
    %v546 = vor.u32 1.1754944e-38, %v545
    %v547 = vsel %vm544, %v546, %v542
    %v548 = vmul.f32 1.0, %v547
    %v549 = vmul.f32 %v513, 1.442695
    %v550 = vpow.pop %v549
    %551 = vst [vmem:[#allocation2] sm:$0x1] %v550
    %v552 = vmul.f32 %v548, 1.442695
    %v553 = vpow.pop %v552
    %554 = vst [vmem:[#allocation4] sm:$0x1] %v553
    // Predicated region
    $region18: #{tpu_custom_call.1} parent=1 // pred_check
      _
    $region19: #{tpu_custom_call.1} parent=1 // pred_check_branch
      %556 = sbr.rel (0) target = $region21
    $region20: #{tpu_custom_call.1} parent=1 // pred_region
      %558 = vsyncadd [#allocation3], 0
      %s560 = sshll.u32 [#allocation2], 4
      %s561 = int_to_ptr.vmem [resolvable:$true] %s560
      %s562 = sshll.u32 %s4, 4
      %s563 = int_to_ptr.hbm [resolvable:$true] %s562
      %565 = dma.vmem_to_hbm [thread:$0]  %s561, 16, %s563, [#allocation3]
    $region21: #{tpu_custom_call.1} parent=1 // pred_fallthru
      _
    // Predicated region
    $region22: #{tpu_custom_call.1} parent=1 // pred_check
      _
    $region23: #{tpu_custom_call.1} parent=1 // pred_check_branch
      %567 = sbr.rel (0) target = $region25
    $region24: #{tpu_custom_call.1} parent=1 // pred_region
      %569 = vsyncadd [#allocation5], 0
      %s571 = sshll.u32 [#allocation4], 4
      %s572 = int_to_ptr.vmem [resolvable:$true] %s571
      %s573 = sshll.u32 %s5, 4
      %s574 = int_to_ptr.hbm [resolvable:$true] %s573
      %576 = dma.vmem_to_hbm [thread:$0]  %s572, 16, %s574, [#allocation5]
    $region25: #{tpu_custom_call.1} parent=1 // pred_fallthru
      _
    // Predicated region
    $region26: #{tpu_custom_call.1} parent=1 // pred_check
      _
    $region27: #{tpu_custom_call.1} parent=1 // pred_check_branch
      %578 = sbr.rel (0) target = $region29
    $region28: #{tpu_custom_call.1} parent=1 // pred_region
      %580 = dma.done [#allocation3], 16
    $region29: #{tpu_custom_call.1} parent=1 // pred_fallthru
      _
    // Predicated region
    $region30: #{tpu_custom_call.1} parent=1 // pred_check
      _
    $region31: #{tpu_custom_call.1} parent=1 // pred_check_branch
      %582 = sbr.rel (0) target = $region33
    $region32: #{tpu_custom_call.1} parent=1 // pred_region
      %584 = dma.done [#allocation5], 16
    $region33: #{tpu_custom_call.1} parent=1 // pred_fallthru
      _
    %585 = vsyncpa [#allocation3], 1
    %586 = vsyncpa [#allocation5], 1

</llo_original>
